<compile_context>
chip_gen: v5e
topology: v5e:2x2
jax: 0.10.0
libtpu: 0.0.40
codegen_flags: <defaults>
</compile_context>

<pallas_src>
import functools

import jax
import jax.numpy as jnp
import numpy as np
from jax.experimental import pallas as pl
from jax.experimental.pallas import tpu as pltpu

# -------------------- config (small shapes, consistent with the module) --------------------
EMBED = 32      # embed_size
HIDDEN = 32     # hidden_size  (4*HIDDEN = 128 -> gates fill exactly one lane tile)
VOCAB = 40      # vocab_size
NPAD = pl.cdiv(VOCAB, 128) * 128   # lane-dense padded logits width (128)


# -------------------- fused decoder kernel --------------------
def _decoder_kernel(x_ref, wih_ref, whh_ref, b_ref, fw_ref, fb_ref, out_ref,
                    xproj_ref, hall_ref, *, T, B):
    """Fused: input projection (all t) -> LSTM recurrence -> output projection.

    x_ref:    (T*B, E)    time-major rows (t0b0, t0b1, t1b0, ...)
    wih_ref:  (E, 4H)     W_ih^T
    whh_ref:  (H, 4H)     W_hh^T
    b_ref:    (1, 4H)     b_ih + b_hh
    fw_ref:   (H, NPAD)   fcn weight^T, zero-padded on the lane axis
    fb_ref:   (1, NPAD)   fcn bias, zero-padded
    out_ref:  (T*B, NPAD) padded logits (lane-dense stores)
    xproj_ref:(T*B, 4H)   VMEM scratch, precomputed input projection
    hall_ref: (T*B, H)    VMEM scratch, all hidden states
    """
    H = whh_ref.shape[0]

    # 1) Hoisted input projection for every timestep: one MXU-friendly matmul.
    xproj_ref[...] = (
        jnp.dot(x_ref[...], wih_ref[...], preferred_element_type=jnp.float32)
        + b_ref[...]
    )

    # 2) Recurrence: single grid point, fully unrolled in-kernel loop; h/c live in vregs.
    def step(t, carry):
        h, c = carry
        r0 = pl.multiple_of(t * B, B)
        gates = xproj_ref[pl.ds(r0, B), :] + jnp.dot(
            h, whh_ref[...], preferred_element_type=jnp.float32
        )                                                # (B, 4H), PyTorch order i,f,g,o
        sg = jax.nn.sigmoid(gates)                       # whole-vreg EUP
        tg = jnp.tanh(gates)                             # whole-vreg EUP
        i = sg[:, 0 * H:1 * H]
        f = sg[:, 1 * H:2 * H]
        g = tg[:, 2 * H:3 * H]
        o = sg[:, 3 * H:4 * H]
        c_new = f * c + i * g
        h_new = o * jnp.tanh(c_new)
        hall_ref[pl.ds(r0, B), :] = h_new
        return h_new, c_new

    zeros = jnp.zeros((B, H), jnp.float32)
    jax.lax.fori_loop(0, T, step, (zeros, zeros), unroll=True)

    # 3) Output projection (Dropout = identity in eval), lane-dense padded to NPAD.
    out_ref[...] = (
        jnp.dot(hall_ref[...], fw_ref[...], preferred_element_type=jnp.float32)
        + fb_ref[...]
    )


def decoder_pallas(params, features, captions):
    """features: (B, EMBED) f32; captions: (B, L) int32 -> logits (B, L, VOCAB)."""
    B, E = features.shape
    # Embedding gather + concat stay in plain JAX (tiny, data-dependent gather).
    emb = jnp.take(params["emb_table"], captions[:, :-1], axis=0)        # (B, L-1, E)
    x = jnp.concatenate([features[:, None, :], emb], axis=1)             # (B, T, E)
    T = x.shape[1]
    x2d = jnp.transpose(x, (1, 0, 2)).reshape(T * B, E)                  # time-major rows

    H = HIDDEN
    w_ih_t = jnp.transpose(params["w_ih"])                               # (E, 4H)
    w_hh_t = jnp.transpose(params["w_hh"])                               # (H, 4H)
    bias = (params["b_ih"] + params["b_hh"]).reshape(1, 4 * H)

    # Pad fcn weight/bias to a lane-dense 128-wide output slab (sliced back below).
    fcn_w_pad = jnp.zeros((H, NPAD), jnp.float32).at[:, :VOCAB].set(
        jnp.transpose(params["fcn_w"]))
    fcn_b_pad = jnp.zeros((1, NPAD), jnp.float32).at[0, :VOCAB].set(params["fcn_b"])

    kernel = functools.partial(_decoder_kernel, T=T, B=B)
    out = pl.pallas_call(
        kernel,
        out_shape=jax.ShapeDtypeStruct((T * B, NPAD), jnp.float32),
        grid=(1,),
        in_specs=[
            pl.BlockSpec((T * B, E), lambda i: (0, 0)),
            pl.BlockSpec((E, 4 * H), lambda i: (0, 0)),
            pl.BlockSpec((H, 4 * H), lambda i: (0, 0)),
            pl.BlockSpec((1, 4 * H), lambda i: (0, 0)),
            pl.BlockSpec((H, NPAD), lambda i: (0, 0)),
            pl.BlockSpec((1, NPAD), lambda i: (0, 0)),
        ],
        out_specs=pl.BlockSpec((T * B, NPAD), lambda i: (0, 0)),
        scratch_shapes=[
            pltpu.VMEM((T * B, 4 * H), jnp.float32),   # xproj
            pltpu.VMEM((T * B, H), jnp.float32),       # all hidden states
        ],
        compiler_params=pltpu.CompilerParams(dimension_semantics=("arbitrary",)),
    )(x2d, w_ih_t, w_hh_t, bias, fcn_w_pad, fcn_b_pad)

    # (T*B, NPAD) -> (B, T, VOCAB); tiny wrapper-side transpose/slice.
    return jnp.transpose(out.reshape(T, B, NPAD), (1, 0, 2))[:, :, :VOCAB]


@jax.jit
def decoder_forward(params, features, captions):
    return decoder_pallas(params, features, captions)


# -------------------- pure-JAX reference (for a correctness sanity check) --------------------
def decoder_reference(p, features, captions):
    emb = jnp.take(p["emb_table"], captions[:, :-1], axis=0)
    x = jnp.concatenate([features[:, None, :], emb], axis=1)             # (B, T, E)
    B = x.shape[0]
    H = HIDDEN
    w_ih_t = jnp.transpose(p["w_ih"])
    w_hh_t = jnp.transpose(p["w_hh"])
    bias = p["b_ih"] + p["b_hh"]

    def step(carry, x_t):
        h, c = carry
        gates = x_t @ w_ih_t + h @ w_hh_t + bias
        i = jax.nn.sigmoid(gates[:, 0 * H:1 * H])
        f = jax.nn.sigmoid(gates[:, 1 * H:2 * H])
        g = jnp.tanh(gates[:, 2 * H:3 * H])
        o = jax.nn.sigmoid(gates[:, 3 * H:4 * H])
        c = f * c + i * g
        h = o * jnp.tanh(c)
        return (h, c), h

    h0 = jnp.zeros((B, H), jnp.float32)
    _, hs = jax.lax.scan(step, (h0, h0), jnp.transpose(x, (1, 0, 2)))
    h_bt = jnp.transpose(hs, (1, 0, 2))                                   # (B, T, H)
    return h_bt @ jnp.transpose(p["fcn_w"]) + p["fcn_b"]


# -------------------- deterministic parameter init --------------------
def init_params(key):
    keys = iter(jax.random.split(key, 8))

    def nrm(shape, s):
        return s * jax.random.normal(next(keys), shape, jnp.float32)

    return dict(
        emb_table=nrm((VOCAB, EMBED), 0.1),        # nn.Embedding weight
        w_ih=nrm((4 * HIDDEN, EMBED), 0.1),        # nn.LSTM weight_ih_l0
        w_hh=nrm((4 * HIDDEN, HIDDEN), 0.1),       # nn.LSTM weight_hh_l0
        b_ih=nrm((4 * HIDDEN,), 0.1),
        b_hh=nrm((4 * HIDDEN,), 0.1),
        fcn_w=nrm((VOCAB, HIDDEN), 0.1),           # nn.Linear(hidden, vocab) weight (out,in)
        fcn_b=nrm((VOCAB,), 0.01),
    )


if __name__ == "__main__":
    key = jax.random.PRNGKey(0)
    pkey, fkey, ckey = jax.random.split(key, 3)
    params = init_params(pkey)
    features = jax.random.normal(fkey, (2, EMBED), jnp.float32)          # encoder output (B, E)
    captions = jax.random.randint(ckey, (2, 9), 0, VOCAB, dtype=jnp.int32)

    out = decoder_forward(params, features, captions)
    out = jax.block_until_ready(out)
    assert out.shape == (2, 9, VOCAB), out.shape
    assert out.dtype == jnp.float32

    ref = jax.block_until_ready(decoder_reference(params, features, captions))
    assert np.allclose(np.asarray(out), np.asarray(ref), rtol=1e-2, atol=1e-2)

    # TODO(synk): generate_caption (greedy decode with host-side Python loop / vocab.itos) is an
    # inference utility outside forward(); not implemented as a kernel.
    print("KERNEL_OK")
</pallas_src>

<mosaic_0001>
module attributes {stable_mosaic.version = 11 : i64} {
  func.func @_decoder_kernel(%arg0: i32, %arg1: memref<18x32xf32, #tpu.memory_space<vmem>>, %arg2: memref<32x128xf32, #tpu.memory_space<vmem>>, %arg3: memref<32x128xf32, #tpu.memory_space<vmem>>, %arg4: memref<1x128xf32, #tpu.memory_space<vmem>>, %arg5: memref<32x128xf32, #tpu.memory_space<vmem>>, %arg6: memref<1x128xf32, #tpu.memory_space<vmem>>, %arg7: memref<18x128xf32, #tpu.memory_space<vmem>>, %arg8: memref<18x128xf32, #tpu.memory_space<vmem>>, %arg9: memref<18x32xf32, #tpu.memory_space<vmem>>) attributes {dimension_semantics = [#tpu.dimension_semantics<arbitrary>], iteration_bounds = array<i64: 1>, scalar_prefetch = 0 : i64, scratch_operands = 2 : i64, tpu.core_type = #tpu.core_type<tc>, window_params = [{pipeline_mode = #tpu.pipeline_mode<synchronous>, transform_indices = @transform_0, window_bounds = array<i64: 18, 32>}, {pipeline_mode = #tpu.pipeline_mode<synchronous>, transform_indices = @transform_1, window_bounds = array<i64: 32, 128>}, {pipeline_mode = #tpu.pipeline_mode<synchronous>, transform_indices = @transform_2, window_bounds = array<i64: 32, 128>}, {pipeline_mode = #tpu.pipeline_mode<synchronous>, transform_indices = @transform_3, window_bounds = array<i64: 1, 128>}, {pipeline_mode = #tpu.pipeline_mode<synchronous>, transform_indices = @transform_4, window_bounds = array<i64: 32, 128>}, {pipeline_mode = #tpu.pipeline_mode<synchronous>, transform_indices = @transform_5, window_bounds = array<i64: 1, 128>}, {pipeline_mode = #tpu.pipeline_mode<synchronous>, transform_indices = @transform_6, window_bounds = array<i64: 18, 128>}]} {
    %c0 = arith.constant 0 : index
    %c0_0 = arith.constant 0 : index
    %0 = vector.load %arg1[%c0, %c0_0] : memref<18x32xf32, #tpu.memory_space<vmem>>, vector<18x32xf32>
    %c0_1 = arith.constant 0 : index
    %c0_2 = arith.constant 0 : index
    %1 = vector.load %arg2[%c0_1, %c0_2] : memref<32x128xf32, #tpu.memory_space<vmem>>, vector<32x128xf32>
    %cst = arith.constant dense<0.000000e+00> : vector<18x128xf32>
    %2 = tpu.matmul %0, %1, %cst {dimension_numbers = #tpu.dot_dimension_numbers<[1], [0], [0], [1], [0, 0, 1, 1], [], []>} : vector<18x32xf32>, vector<32x128xf32>, vector<18x128xf32> -> vector<18x128xf32>
    %c0_3 = arith.constant 0 : index
    %c0_4 = arith.constant 0 : index
    %3 = vector.load %arg4[%c0_3, %c0_4] : memref<1x128xf32, #tpu.memory_space<vmem>>, vector<1x128xf32>
    %4 = vector.broadcast %3 : vector<1x128xf32> to vector<18x128xf32>
    %5 = arith.addf %2, %4 : vector<18x128xf32>
    %c0_5 = arith.constant 0 : index
    %c0_6 = arith.constant 0 : index
    %6 = vector.load %arg8[%c0_5, %c0_6] : memref<18x128xf32, #tpu.memory_space<vmem>>, vector<18x128xf32>
    tpu.vector_store %arg8[%c0_5, %c0_6], %5 {strides = array<i32>} : memref<18x128xf32, #tpu.memory_space<vmem>>, vector<18x128xf32>,
    %cst_7 = arith.constant 0.000000e+00 : f32
    %7 = vector.broadcast %cst_7 : f32 to vector<2x32xf32>
    %c0_i32 = arith.constant 0 : i32
    %c2_i32 = arith.constant 2 : i32
    %8 = arith.muli %c0_i32, %c2_i32 : i32
    %9 = tpu.assume_multiple %8, 2 : i32
    %10 = arith.index_cast %9 : i32 to index
    %c0_8 = arith.constant 0 : index
    %11 = vector.load %arg8[%10, %c0_8] : memref<18x128xf32, #tpu.memory_space<vmem>>, vector<2x128xf32>
    %c0_9 = arith.constant 0 : index
    %c0_10 = arith.constant 0 : index
    %12 = vector.load %arg3[%c0_9, %c0_10] : memref<32x128xf32, #tpu.memory_space<vmem>>, vector<32x128xf32>
    %cst_11 = arith.constant dense<0.000000e+00> : vector<2x128xf32>
    %13 = tpu.matmul %7, %12, %cst_11 {dimension_numbers = #tpu.dot_dimension_numbers<[1], [0], [0], [1], [0, 0, 1, 1], [], []>} : vector<2x32xf32>, vector<32x128xf32>, vector<2x128xf32> -> vector<2x128xf32>
    %14 = arith.addf %11, %13 : vector<2x128xf32>
    %15 = arith.negf %14 : vector<2x128xf32>
    %16 = math.exp %15 : vector<2x128xf32>
    %cst_12 = arith.constant 1.000000e+00 : f32
    %17 = vector.broadcast %cst_12 : f32 to vector<2x128xf32>
    %18 = arith.addf %17, %16 : vector<2x128xf32>
    %19 = arith.divf %17, %18 : vector<2x128xf32>
    %20 = math.tanh %14 : vector<2x128xf32>
    %21 = vector.extract_strided_slice %19 {offsets = [0, 0], sizes = [2, 32], strides = [1, 1]} : vector<2x128xf32> to vector<2x32xf32>
    %22 = vector.extract_strided_slice %19 {offsets = [0, 32], sizes = [2, 32], strides = [1, 1]} : vector<2x128xf32> to vector<2x32xf32>
    %23 = vector.extract_strided_slice %20 {offsets = [0, 64], sizes = [2, 32], strides = [1, 1]} : vector<2x128xf32> to vector<2x32xf32>
    %24 = vector.extract_strided_slice %19 {offsets = [0, 96], sizes = [2, 32], strides = [1, 1]} : vector<2x128xf32> to vector<2x32xf32>
    %25 = arith.mulf %22, %7 : vector<2x32xf32>
    %26 = arith.mulf %21, %23 : vector<2x32xf32>
    %27 = arith.addf %25, %26 : vector<2x32xf32>
    %28 = math.tanh %27 : vector<2x32xf32>
    %29 = arith.mulf %24, %28 : vector<2x32xf32>
    %30 = arith.index_cast %9 : i32 to index
    %c0_13 = arith.constant 0 : index
    %31 = vector.load %arg9[%30, %c0_13] : memref<18x32xf32, #tpu.memory_space<vmem>>, vector<2x32xf32>
    tpu.vector_store %arg9[%30, %c0_13], %29 {strides = array<i32>} : memref<18x32xf32, #tpu.memory_space<vmem>>, vector<2x32xf32>,
    %c1_i32 = arith.constant 1 : i32
    %c2_i32_14 = arith.constant 2 : i32
    %32 = arith.muli %c1_i32, %c2_i32_14 : i32
    %33 = tpu.assume_multiple %32, 2 : i32
    %34 = arith.index_cast %33 : i32 to index
    %c0_15 = arith.constant 0 : index
    %35 = vector.load %arg8[%34, %c0_15] : memref<18x128xf32, #tpu.memory_space<vmem>>, vector<2x128xf32>
    %c0_16 = arith.constant 0 : index
    %c0_17 = arith.constant 0 : index
    %36 = vector.load %arg3[%c0_16, %c0_17] : memref<32x128xf32, #tpu.memory_space<vmem>>, vector<32x128xf32>
    %cst_18 = arith.constant dense<0.000000e+00> : vector<2x128xf32>
    %37 = tpu.matmul %29, %36, %cst_18 {dimension_numbers = #tpu.dot_dimension_numbers<[1], [0], [0], [1], [0, 0, 1, 1], [], []>} : vector<2x32xf32>, vector<32x128xf32>, vector<2x128xf32> -> vector<2x128xf32>
    %38 = arith.addf %35, %37 : vector<2x128xf32>
    %39 = arith.negf %38 : vector<2x128xf32>
    %40 = math.exp %39 : vector<2x128xf32>
    %cst_19 = arith.constant 1.000000e+00 : f32
    %41 = vector.broadcast %cst_19 : f32 to vector<2x128xf32>
    %42 = arith.addf %41, %40 : vector<2x128xf32>
    %43 = arith.divf %41, %42 : vector<2x128xf32>
    %44 = math.tanh %38 : vector<2x128xf32>
    %45 = vector.extract_strided_slice %43 {offsets = [0, 0], sizes = [2, 32], strides = [1, 1]} : vector<2x128xf32> to vector<2x32xf32>
    %46 = vector.extract_strided_slice %43 {offsets = [0, 32], sizes = [2, 32], strides = [1, 1]} : vector<2x128xf32> to vector<2x32xf32>
    %47 = vector.extract_strided_slice %44 {offsets = [0, 64], sizes = [2, 32], strides = [1, 1]} : vector<2x128xf32> to vector<2x32xf32>
    %48 = vector.extract_strided_slice %43 {offsets = [0, 96], sizes = [2, 32], strides = [1, 1]} : vector<2x128xf32> to vector<2x32xf32>
    %49 = arith.mulf %46, %27 : vector<2x32xf32>
    %50 = arith.mulf %45, %47 : vector<2x32xf32>
    %51 = arith.addf %49, %50 : vector<2x32xf32>
    %52 = math.tanh %51 : vector<2x32xf32>
    %53 = arith.mulf %48, %52 : vector<2x32xf32>
    %54 = arith.index_cast %33 : i32 to index
    %c0_20 = arith.constant 0 : index
    %55 = vector.load %arg9[%54, %c0_20] : memref<18x32xf32, #tpu.memory_space<vmem>>, vector<2x32xf32>
    tpu.vector_store %arg9[%54, %c0_20], %53 {strides = array<i32>} : memref<18x32xf32, #tpu.memory_space<vmem>>, vector<2x32xf32>,
    %c2_i32_21 = arith.constant 2 : i32
    %c2_i32_22 = arith.constant 2 : i32
    %56 = arith.muli %c2_i32_21, %c2_i32_22 : i32
    %57 = tpu.assume_multiple %56, 2 : i32
    %58 = arith.index_cast %57 : i32 to index
    %c0_23 = arith.constant 0 : index
    %59 = vector.load %arg8[%58, %c0_23] : memref<18x128xf32, #tpu.memory_space<vmem>>, vector<2x128xf32>
    %c0_24 = arith.constant 0 : index
    %c0_25 = arith.constant 0 : index
    %60 = vector.load %arg3[%c0_24, %c0_25] : memref<32x128xf32, #tpu.memory_space<vmem>>, vector<32x128xf32>
    %cst_26 = arith.constant dense<0.000000e+00> : vector<2x128xf32>
    %61 = tpu.matmul %53, %60, %cst_26 {dimension_numbers = #tpu.dot_dimension_numbers<[1], [0], [0], [1], [0, 0, 1, 1], [], []>} : vector<2x32xf32>, vector<32x128xf32>, vector<2x128xf32> -> vector<2x128xf32>
    %62 = arith.addf %59, %61 : vector<2x128xf32>
    %63 = arith.negf %62 : vector<2x128xf32>
    %64 = math.exp %63 : vector<2x128xf32>
    %cst_27 = arith.constant 1.000000e+00 : f32
    %65 = vector.broadcast %cst_27 : f32 to vector<2x128xf32>
    %66 = arith.addf %65, %64 : vector<2x128xf32>
    %67 = arith.divf %65, %66 : vector<2x128xf32>
    %68 = math.tanh %62 : vector<2x128xf32>
    %69 = vector.extract_strided_slice %67 {offsets = [0, 0], sizes = [2, 32], strides = [1, 1]} : vector<2x128xf32> to vector<2x32xf32>
    %70 = vector.extract_strided_slice %67 {offsets = [0, 32], sizes = [2, 32], strides = [1, 1]} : vector<2x128xf32> to vector<2x32xf32>
    %71 = vector.extract_strided_slice %68 {offsets = [0, 64], sizes = [2, 32], strides = [1, 1]} : vector<2x128xf32> to vector<2x32xf32>
    %72 = vector.extract_strided_slice %67 {offsets = [0, 96], sizes = [2, 32], strides = [1, 1]} : vector<2x128xf32> to vector<2x32xf32>
    %73 = arith.mulf %70, %51 : vector<2x32xf32>
    %74 = arith.mulf %69, %71 : vector<2x32xf32>
    %75 = arith.addf %73, %74 : vector<2x32xf32>
    %76 = math.tanh %75 : vector<2x32xf32>
    %77 = arith.mulf %72, %76 : vector<2x32xf32>
    %78 = arith.index_cast %57 : i32 to index
    %c0_28 = arith.constant 0 : index
    %79 = vector.load %arg9[%78, %c0_28] : memref<18x32xf32, #tpu.memory_space<vmem>>, vector<2x32xf32>
    tpu.vector_store %arg9[%78, %c0_28], %77 {strides = array<i32>} : memref<18x32xf32, #tpu.memory_space<vmem>>, vector<2x32xf32>,
    %c3_i32 = arith.constant 3 : i32
    %c2_i32_29 = arith.constant 2 : i32
    %80 = arith.muli %c3_i32, %c2_i32_29 : i32
    %81 = tpu.assume_multiple %80, 2 : i32
    %82 = arith.index_cast %81 : i32 to index
    %c0_30 = arith.constant 0 : index
    %83 = vector.load %arg8[%82, %c0_30] : memref<18x128xf32, #tpu.memory_space<vmem>>, vector<2x128xf32>
    %c0_31 = arith.constant 0 : index
    %c0_32 = arith.constant 0 : index
    %84 = vector.load %arg3[%c0_31, %c0_32] : memref<32x128xf32, #tpu.memory_space<vmem>>, vector<32x128xf32>
    %cst_33 = arith.constant dense<0.000000e+00> : vector<2x128xf32>
    %85 = tpu.matmul %77, %84, %cst_33 {dimension_numbers = #tpu.dot_dimension_numbers<[1], [0], [0], [1], [0, 0, 1, 1], [], []>} : vector<2x32xf32>, vector<32x128xf32>, vector<2x128xf32> -> vector<2x128xf32>
    %86 = arith.addf %83, %85 : vector<2x128xf32>
    %87 = arith.negf %86 : vector<2x128xf32>
    %88 = math.exp %87 : vector<2x128xf32>
    %cst_34 = arith.constant 1.000000e+00 : f32
    %89 = vector.broadcast %cst_34 : f32 to vector<2x128xf32>
    %90 = arith.addf %89, %88 : vector<2x128xf32>
    %91 = arith.divf %89, %90 : vector<2x128xf32>
    %92 = math.tanh %86 : vector<2x128xf32>
    %93 = vector.extract_strided_slice %91 {offsets = [0, 0], sizes = [2, 32], strides = [1, 1]} : vector<2x128xf32> to vector<2x32xf32>
    %94 = vector.extract_strided_slice %91 {offsets = [0, 32], sizes = [2, 32], strides = [1, 1]} : vector<2x128xf32> to vector<2x32xf32>
    %95 = vector.extract_strided_slice %92 {offsets = [0, 64], sizes = [2, 32], strides = [1, 1]} : vector<2x128xf32> to vector<2x32xf32>
    %96 = vector.extract_strided_slice %91 {offsets = [0, 96], sizes = [2, 32], strides = [1, 1]} : vector<2x128xf32> to vector<2x32xf32>
    %97 = arith.mulf %94, %75 : vector<2x32xf32>
    %98 = arith.mulf %93, %95 : vector<2x32xf32>
    %99 = arith.addf %97, %98 : vector<2x32xf32>
    %100 = math.tanh %99 : vector<2x32xf32>
    %101 = arith.mulf %96, %100 : vector<2x32xf32>
    %102 = arith.index_cast %81 : i32 to index
    %c0_35 = arith.constant 0 : index
    %103 = vector.load %arg9[%102, %c0_35] : memref<18x32xf32, #tpu.memory_space<vmem>>, vector<2x32xf32>
    tpu.vector_store %arg9[%102, %c0_35], %101 {strides = array<i32>} : memref<18x32xf32, #tpu.memory_space<vmem>>, vector<2x32xf32>,
    %c4_i32 = arith.constant 4 : i32
    %c2_i32_36 = arith.constant 2 : i32
    %104 = arith.muli %c4_i32, %c2_i32_36 : i32
    %105 = tpu.assume_multiple %104, 2 : i32
    %106 = arith.index_cast %105 : i32 to index
    %c0_37 = arith.constant 0 : index
    %107 = vector.load %arg8[%106, %c0_37] : memref<18x128xf32, #tpu.memory_space<vmem>>, vector<2x128xf32>
    %c0_38 = arith.constant 0 : index
    %c0_39 = arith.constant 0 : index
    %108 = vector.load %arg3[%c0_38, %c0_39] : memref<32x128xf32, #tpu.memory_space<vmem>>, vector<32x128xf32>
    %cst_40 = arith.constant dense<0.000000e+00> : vector<2x128xf32>
    %109 = tpu.matmul %101, %108, %cst_40 {dimension_numbers = #tpu.dot_dimension_numbers<[1], [0], [0], [1], [0, 0, 1, 1], [], []>} : vector<2x32xf32>, vector<32x128xf32>, vector<2x128xf32> -> vector<2x128xf32>
    %110 = arith.addf %107, %109 : vector<2x128xf32>
    %111 = arith.negf %110 : vector<2x128xf32>
    %112 = math.exp %111 : vector<2x128xf32>
    %cst_41 = arith.constant 1.000000e+00 : f32
    %113 = vector.broadcast %cst_41 : f32 to vector<2x128xf32>
    %114 = arith.addf %113, %112 : vector<2x128xf32>
    %115 = arith.divf %113, %114 : vector<2x128xf32>
    %116 = math.tanh %110 : vector<2x128xf32>
    %117 = vector.extract_strided_slice %115 {offsets = [0, 0], sizes = [2, 32], strides = [1, 1]} : vector<2x128xf32> to vector<2x32xf32>
    %118 = vector.extract_strided_slice %115 {offsets = [0, 32], sizes = [2, 32], strides = [1, 1]} : vector<2x128xf32> to vector<2x32xf32>
    %119 = vector.extract_strided_slice %116 {offsets = [0, 64], sizes = [2, 32], strides = [1, 1]} : vector<2x128xf32> to vector<2x32xf32>
    %120 = vector.extract_strided_slice %115 {offsets = [0, 96], sizes = [2, 32], strides = [1, 1]} : vector<2x128xf32> to vector<2x32xf32>
    %121 = arith.mulf %118, %99 : vector<2x32xf32>
    %122 = arith.mulf %117, %119 : vector<2x32xf32>
    %123 = arith.addf %121, %122 : vector<2x32xf32>
    %124 = math.tanh %123 : vector<2x32xf32>
    %125 = arith.mulf %120, %124 : vector<2x32xf32>
    %126 = arith.index_cast %105 : i32 to index
    %c0_42 = arith.constant 0 : index
    %127 = vector.load %arg9[%126, %c0_42] : memref<18x32xf32, #tpu.memory_space<vmem>>, vector<2x32xf32>
    tpu.vector_store %arg9[%126, %c0_42], %125 {strides = array<i32>} : memref<18x32xf32, #tpu.memory_space<vmem>>, vector<2x32xf32>,
    %c5_i32 = arith.constant 5 : i32
    %c2_i32_43 = arith.constant 2 : i32
    %128 = arith.muli %c5_i32, %c2_i32_43 : i32
    %129 = tpu.assume_multiple %128, 2 : i32
    %130 = arith.index_cast %129 : i32 to index
    %c0_44 = arith.constant 0 : index
    %131 = vector.load %arg8[%130, %c0_44] : memref<18x128xf32, #tpu.memory_space<vmem>>, vector<2x128xf32>
    %c0_45 = arith.constant 0 : index
    %c0_46 = arith.constant 0 : index
    %132 = vector.load %arg3[%c0_45, %c0_46] : memref<32x128xf32, #tpu.memory_space<vmem>>, vector<32x128xf32>
    %cst_47 = arith.constant dense<0.000000e+00> : vector<2x128xf32>
    %133 = tpu.matmul %125, %132, %cst_47 {dimension_numbers = #tpu.dot_dimension_numbers<[1], [0], [0], [1], [0, 0, 1, 1], [], []>} : vector<2x32xf32>, vector<32x128xf32>, vector<2x128xf32> -> vector<2x128xf32>
    %134 = arith.addf %131, %133 : vector<2x128xf32>
    %135 = arith.negf %134 : vector<2x128xf32>
    %136 = math.exp %135 : vector<2x128xf32>
    %cst_48 = arith.constant 1.000000e+00 : f32
    %137 = vector.broadcast %cst_48 : f32 to vector<2x128xf32>
    %138 = arith.addf %137, %136 : vector<2x128xf32>
    %139 = arith.divf %137, %138 : vector<2x128xf32>
    %140 = math.tanh %134 : vector<2x128xf32>
    %141 = vector.extract_strided_slice %139 {offsets = [0, 0], sizes = [2, 32], strides = [1, 1]} : vector<2x128xf32> to vector<2x32xf32>
    %142 = vector.extract_strided_slice %139 {offsets = [0, 32], sizes = [2, 32], strides = [1, 1]} : vector<2x128xf32> to vector<2x32xf32>
    %143 = vector.extract_strided_slice %140 {offsets = [0, 64], sizes = [2, 32], strides = [1, 1]} : vector<2x128xf32> to vector<2x32xf32>
    %144 = vector.extract_strided_slice %139 {offsets = [0, 96], sizes = [2, 32], strides = [1, 1]} : vector<2x128xf32> to vector<2x32xf32>
    %145 = arith.mulf %142, %123 : vector<2x32xf32>
    %146 = arith.mulf %141, %143 : vector<2x32xf32>
    %147 = arith.addf %145, %146 : vector<2x32xf32>
    %148 = math.tanh %147 : vector<2x32xf32>
    %149 = arith.mulf %144, %148 : vector<2x32xf32>
    %150 = arith.index_cast %129 : i32 to index
    %c0_49 = arith.constant 0 : index
    %151 = vector.load %arg9[%150, %c0_49] : memref<18x32xf32, #tpu.memory_space<vmem>>, vector<2x32xf32>
    tpu.vector_store %arg9[%150, %c0_49], %149 {strides = array<i32>} : memref<18x32xf32, #tpu.memory_space<vmem>>, vector<2x32xf32>,
    %c6_i32 = arith.constant 6 : i32
    %c2_i32_50 = arith.constant 2 : i32
    %152 = arith.muli %c6_i32, %c2_i32_50 : i32
    %153 = tpu.assume_multiple %152, 2 : i32
    %154 = arith.index_cast %153 : i32 to index
    %c0_51 = arith.constant 0 : index
    %155 = vector.load %arg8[%154, %c0_51] : memref<18x128xf32, #tpu.memory_space<vmem>>, vector<2x128xf32>
    %c0_52 = arith.constant 0 : index
    %c0_53 = arith.constant 0 : index
    %156 = vector.load %arg3[%c0_52, %c0_53] : memref<32x128xf32, #tpu.memory_space<vmem>>, vector<32x128xf32>
    %cst_54 = arith.constant dense<0.000000e+00> : vector<2x128xf32>
    %157 = tpu.matmul %149, %156, %cst_54 {dimension_numbers = #tpu.dot_dimension_numbers<[1], [0], [0], [1], [0, 0, 1, 1], [], []>} : vector<2x32xf32>, vector<32x128xf32>, vector<2x128xf32> -> vector<2x128xf32>
    %158 = arith.addf %155, %157 : vector<2x128xf32>
    %159 = arith.negf %158 : vector<2x128xf32>
    %160 = math.exp %159 : vector<2x128xf32>
    %cst_55 = arith.constant 1.000000e+00 : f32
    %161 = vector.broadcast %cst_55 : f32 to vector<2x128xf32>
    %162 = arith.addf %161, %160 : vector<2x128xf32>
    %163 = arith.divf %161, %162 : vector<2x128xf32>
    %164 = math.tanh %158 : vector<2x128xf32>
    %165 = vector.extract_strided_slice %163 {offsets = [0, 0], sizes = [2, 32], strides = [1, 1]} : vector<2x128xf32> to vector<2x32xf32>
    %166 = vector.extract_strided_slice %163 {offsets = [0, 32], sizes = [2, 32], strides = [1, 1]} : vector<2x128xf32> to vector<2x32xf32>
    %167 = vector.extract_strided_slice %164 {offsets = [0, 64], sizes = [2, 32], strides = [1, 1]} : vector<2x128xf32> to vector<2x32xf32>
    %168 = vector.extract_strided_slice %163 {offsets = [0, 96], sizes = [2, 32], strides = [1, 1]} : vector<2x128xf32> to vector<2x32xf32>
    %169 = arith.mulf %166, %147 : vector<2x32xf32>
    %170 = arith.mulf %165, %167 : vector<2x32xf32>
    %171 = arith.addf %169, %170 : vector<2x32xf32>
    %172 = math.tanh %171 : vector<2x32xf32>
    %173 = arith.mulf %168, %172 : vector<2x32xf32>
    %174 = arith.index_cast %153 : i32 to index
    %c0_56 = arith.constant 0 : index
    %175 = vector.load %arg9[%174, %c0_56] : memref<18x32xf32, #tpu.memory_space<vmem>>, vector<2x32xf32>
    tpu.vector_store %arg9[%174, %c0_56], %173 {strides = array<i32>} : memref<18x32xf32, #tpu.memory_space<vmem>>, vector<2x32xf32>,
    %c7_i32 = arith.constant 7 : i32
    %c2_i32_57 = arith.constant 2 : i32
    %176 = arith.muli %c7_i32, %c2_i32_57 : i32
    %177 = tpu.assume_multiple %176, 2 : i32
    %178 = arith.index_cast %177 : i32 to index
    %c0_58 = arith.constant 0 : index
    %179 = vector.load %arg8[%178, %c0_58] : memref<18x128xf32, #tpu.memory_space<vmem>>, vector<2x128xf32>
    %c0_59 = arith.constant 0 : index
    %c0_60 = arith.constant 0 : index
    %180 = vector.load %arg3[%c0_59, %c0_60] : memref<32x128xf32, #tpu.memory_space<vmem>>, vector<32x128xf32>
    %cst_61 = arith.constant dense<0.000000e+00> : vector<2x128xf32>
    %181 = tpu.matmul %173, %180, %cst_61 {dimension_numbers = #tpu.dot_dimension_numbers<[1], [0], [0], [1], [0, 0, 1, 1], [], []>} : vector<2x32xf32>, vector<32x128xf32>, vector<2x128xf32> -> vector<2x128xf32>
    %182 = arith.addf %179, %181 : vector<2x128xf32>
    %183 = arith.negf %182 : vector<2x128xf32>
    %184 = math.exp %183 : vector<2x128xf32>
    %cst_62 = arith.constant 1.000000e+00 : f32
    %185 = vector.broadcast %cst_62 : f32 to vector<2x128xf32>
    %186 = arith.addf %185, %184 : vector<2x128xf32>
    %187 = arith.divf %185, %186 : vector<2x128xf32>
    %188 = math.tanh %182 : vector<2x128xf32>
    %189 = vector.extract_strided_slice %187 {offsets = [0, 0], sizes = [2, 32], strides = [1, 1]} : vector<2x128xf32> to vector<2x32xf32>
    %190 = vector.extract_strided_slice %187 {offsets = [0, 32], sizes = [2, 32], strides = [1, 1]} : vector<2x128xf32> to vector<2x32xf32>
    %191 = vector.extract_strided_slice %188 {offsets = [0, 64], sizes = [2, 32], strides = [1, 1]} : vector<2x128xf32> to vector<2x32xf32>
    %192 = vector.extract_strided_slice %187 {offsets = [0, 96], sizes = [2, 32], strides = [1, 1]} : vector<2x128xf32> to vector<2x32xf32>
    %193 = arith.mulf %190, %171 : vector<2x32xf32>
    %194 = arith.mulf %189, %191 : vector<2x32xf32>
    %195 = arith.addf %193, %194 : vector<2x32xf32>
    %196 = math.tanh %195 : vector<2x32xf32>
    %197 = arith.mulf %192, %196 : vector<2x32xf32>
    %198 = arith.index_cast %177 : i32 to index
    %c0_63 = arith.constant 0 : index
    %199 = vector.load %arg9[%198, %c0_63] : memref<18x32xf32, #tpu.memory_space<vmem>>, vector<2x32xf32>
    tpu.vector_store %arg9[%198, %c0_63], %197 {strides = array<i32>} : memref<18x32xf32, #tpu.memory_space<vmem>>, vector<2x32xf32>,
    %c8_i32 = arith.constant 8 : i32
    %c2_i32_64 = arith.constant 2 : i32
    %200 = arith.muli %c8_i32, %c2_i32_64 : i32
    %201 = tpu.assume_multiple %200, 2 : i32
    %202 = arith.index_cast %201 : i32 to index
    %c0_65 = arith.constant 0 : index
    %203 = vector.load %arg8[%202, %c0_65] : memref<18x128xf32, #tpu.memory_space<vmem>>, vector<2x128xf32>
    %c0_66 = arith.constant 0 : index
    %c0_67 = arith.constant 0 : index
    %204 = vector.load %arg3[%c0_66, %c0_67] : memref<32x128xf32, #tpu.memory_space<vmem>>, vector<32x128xf32>
    %cst_68 = arith.constant dense<0.000000e+00> : vector<2x128xf32>
    %205 = tpu.matmul %197, %204, %cst_68 {dimension_numbers = #tpu.dot_dimension_numbers<[1], [0], [0], [1], [0, 0, 1, 1], [], []>} : vector<2x32xf32>, vector<32x128xf32>, vector<2x128xf32> -> vector<2x128xf32>
    %206 = arith.addf %203, %205 : vector<2x128xf32>
    %207 = arith.negf %206 : vector<2x128xf32>
    %208 = math.exp %207 : vector<2x128xf32>
    %cst_69 = arith.constant 1.000000e+00 : f32
    %209 = vector.broadcast %cst_69 : f32 to vector<2x128xf32>
    %210 = arith.addf %209, %208 : vector<2x128xf32>
    %211 = arith.divf %209, %210 : vector<2x128xf32>
    %212 = math.tanh %206 : vector<2x128xf32>
    %213 = vector.extract_strided_slice %211 {offsets = [0, 0], sizes = [2, 32], strides = [1, 1]} : vector<2x128xf32> to vector<2x32xf32>
    %214 = vector.extract_strided_slice %211 {offsets = [0, 32], sizes = [2, 32], strides = [1, 1]} : vector<2x128xf32> to vector<2x32xf32>
    %215 = vector.extract_strided_slice %212 {offsets = [0, 64], sizes = [2, 32], strides = [1, 1]} : vector<2x128xf32> to vector<2x32xf32>
    %216 = vector.extract_strided_slice %211 {offsets = [0, 96], sizes = [2, 32], strides = [1, 1]} : vector<2x128xf32> to vector<2x32xf32>
    %217 = arith.mulf %214, %195 : vector<2x32xf32>
    %218 = arith.mulf %213, %215 : vector<2x32xf32>
    %219 = arith.addf %217, %218 : vector<2x32xf32>
    %220 = math.tanh %219 : vector<2x32xf32>
    %221 = arith.mulf %216, %220 : vector<2x32xf32>
    %222 = arith.index_cast %201 : i32 to index
    %c0_70 = arith.constant 0 : index
    %223 = vector.load %arg9[%222, %c0_70] : memref<18x32xf32, #tpu.memory_space<vmem>>, vector<2x32xf32>
    tpu.vector_store %arg9[%222, %c0_70], %221 {strides = array<i32>} : memref<18x32xf32, #tpu.memory_space<vmem>>, vector<2x32xf32>,
    %c9_i32 = arith.constant 9 : i32
    %c0_71 = arith.constant 0 : index
    %c0_72 = arith.constant 0 : index
    %224 = vector.load %arg9[%c0_71, %c0_72] : memref<18x32xf32, #tpu.memory_space<vmem>>, vector<18x32xf32>
    %c0_73 = arith.constant 0 : index
    %c0_74 = arith.constant 0 : index
    %225 = vector.load %arg5[%c0_73, %c0_74] : memref<32x128xf32, #tpu.memory_space<vmem>>, vector<32x128xf32>
    %cst_75 = arith.constant dense<0.000000e+00> : vector<18x128xf32>
    %226 = tpu.matmul %224, %225, %cst_75 {dimension_numbers = #tpu.dot_dimension_numbers<[1], [0], [0], [1], [0, 0, 1, 1], [], []>} : vector<18x32xf32>, vector<32x128xf32>, vector<18x128xf32> -> vector<18x128xf32>
    %c0_76 = arith.constant 0 : index
    %c0_77 = arith.constant 0 : index
    %227 = vector.load %arg6[%c0_76, %c0_77] : memref<1x128xf32, #tpu.memory_space<vmem>>, vector<1x128xf32>
    %228 = vector.broadcast %227 : vector<1x128xf32> to vector<18x128xf32>
    %229 = arith.addf %226, %228 : vector<18x128xf32>
    %c0_78 = arith.constant 0 : index
    %c0_79 = arith.constant 0 : index
    %230 = vector.load %arg7[%c0_78, %c0_79] : memref<18x128xf32, #tpu.memory_space<vmem>>, vector<18x128xf32>
    tpu.vector_store %arg7[%c0_78, %c0_79], %229 {strides = array<i32>} : memref<18x128xf32, #tpu.memory_space<vmem>>, vector<18x128xf32>,
    return
  }
  func.func @transform_0(%arg0: i32) -> (i32, i32) {
    %c0_i32 = arith.constant 0 : i32
    %c0_i32_0 = arith.constant 0 : i32
    %c0_i32_1 = arith.constant 0 : i32
    return %c0_i32, %c0_i32_0 : i32, i32
  }
  func.func @transform_1(%arg0: i32) -> (i32, i32) {
    %c0_i32 = arith.constant 0 : i32
    %c0_i32_0 = arith.constant 0 : i32
    %c0_i32_1 = arith.constant 0 : i32
    return %c0_i32, %c0_i32_0 : i32, i32
  }
  func.func @transform_2(%arg0: i32) -> (i32, i32) {
    %c0_i32 = arith.constant 0 : i32
    %c0_i32_0 = arith.constant 0 : i32
    %c0_i32_1 = arith.constant 0 : i32
    return %c0_i32, %c0_i32_0 : i32, i32
  }
  func.func @transform_3(%arg0: i32) -> (i32, i32) {
    %c0_i32 = arith.constant 0 : i32
    %c0_i32_0 = arith.constant 0 : i32
    %c0_i32_1 = arith.constant 0 : i32
    return %c0_i32, %c0_i32_0 : i32, i32
  }
  func.func @transform_4(%arg0: i32) -> (i32, i32) {
    %c0_i32 = arith.constant 0 : i32
    %c0_i32_0 = arith.constant 0 : i32
    %c0_i32_1 = arith.constant 0 : i32
    return %c0_i32, %c0_i32_0 : i32, i32
  }
  func.func @transform_5(%arg0: i32) -> (i32, i32) {
    %c0_i32 = arith.constant 0 : i32
    %c0_i32_0 = arith.constant 0 : i32
    %c0_i32_1 = arith.constant 0 : i32
    return %c0_i32, %c0_i32_0 : i32, i32
  }
  func.func @transform_6(%arg0: i32) -> (i32, i32) {
    %c0_i32 = arith.constant 0 : i32
    %c0_i32_0 = arith.constant 0 : i32
    %c0_i32_1 = arith.constant 0 : i32
    return %c0_i32, %c0_i32_0 : i32, i32
  }
}

</mosaic_0001>

<llo_original>
// kernel: decoder_forward.1
$region0: #{decoder_forward.1}
  #allocation0 [shape = 'u32[]', space=smem, size = 0x4, offset = 0x4, fixed_abs, tag = 'smem constant byte address 0x4 - core index']
  #allocation1 [shape = 'u32[72,128]{1,0:T(1,128)}', space=vmem, size = 0x9000, scoped, tag = 'internal scratch']
  #allocation2 [shape = 'f32[18,128]{1,0:T(8,128)}', space=vmem, size = 0x3000, scoped, tag = 'scratch operand']
  #allocation3 [shape = 'f32[18,32]{1,0:T(8,128)}', space=vmem, size = 0x3000, scoped, tag = 'scratch operand']
  %s0 = inlined_call_operand.vmem [shape: f32[18,32], index: 0, kind: input, shape index: {}]
  %s1 = inlined_call_operand.vmem [shape: f32[32,128], index: 1, kind: input, shape index: {}]
  %s2 = inlined_call_operand.vmem [shape: f32[32,128], index: 2, kind: input, shape index: {}]
  %s3 = inlined_call_operand.vmem [shape: f32[1,128], index: 3, kind: input, shape index: {}]
  %s4 = inlined_call_operand.vmem [shape: f32[32,128], index: 4, kind: input, shape index: {}]
  %s5 = inlined_call_operand.vmem [shape: f32[1,128], index: 5, kind: input, shape index: {}]
  %s6 = inlined_call_operand.vmem [shape: f32[18,128], index: 6, kind: output, shape index: {}]
  %s7 = sld [smem:[#allocation0]]
  $region34: #{decoder_forward.1} parent=0
    _
  %s9 = ssub.s32 1, %s7
  %s10 = scalar_select 0, %s9, %s7
  // Predicated region
  $region2: #{decoder_forward.1} parent=0 // pred_check
    _
  $region3: #{decoder_forward.1} parent=0 // pred_check_branch
    %12 = sbr.rel (0) target = $region5
  $region4: #{decoder_forward.1} parent=0 // pred_region
    _
  $region5: #{decoder_forward.1} parent=0 // pred_fallthru
    _
  // Predicated region
  $region6: #{decoder_forward.1} parent=0 // pred_check
    _
  $region7: #{decoder_forward.1} parent=0 // pred_check_branch
    %14 = sbr.rel (0) target = $region9
  $region8: #{decoder_forward.1} parent=0 // pred_region
    _
  $region9: #{decoder_forward.1} parent=0 // pred_fallthru
    _
  // Predicated region
  $region10: #{decoder_forward.1} parent=0 // pred_check
    _
  $region11: #{decoder_forward.1} parent=0 // pred_check_branch
    %16 = sbr.rel (0) target = $region13
  $region12: #{decoder_forward.1} parent=0 // pred_region
    _
  $region13: #{decoder_forward.1} parent=0 // pred_fallthru
    _
  // Predicated region
  $region14: #{decoder_forward.1} parent=0 // pred_check
    _
  $region15: #{decoder_forward.1} parent=0 // pred_check_branch
    %18 = sbr.rel (0) target = $region17
  $region16: #{decoder_forward.1} parent=0 // pred_region
    _
  $region17: #{decoder_forward.1} parent=0 // pred_fallthru
    _
  // Predicated region
  $region18: #{decoder_forward.1} parent=0 // pred_check
    _
  $region19: #{decoder_forward.1} parent=0 // pred_check_branch
    %20 = sbr.rel (0) target = $region21
  $region20: #{decoder_forward.1} parent=0 // pred_region
    _
  $region21: #{decoder_forward.1} parent=0 // pred_fallthru
    _
  // Predicated region
  $region22: #{decoder_forward.1} parent=0 // pred_check
    _
  $region23: #{decoder_forward.1} parent=0 // pred_check_branch
    %22 = sbr.rel (0) target = $region25
  $region24: #{decoder_forward.1} parent=0 // pred_region
    _
  $region25: #{decoder_forward.1} parent=0 // pred_fallthru
    _
  %v23 = vld [vmem:[%s0] sm:$0xff]
  %v24 = vld [vmem:[%s0 + $0x8] sm:$0xff]
  %v25 = vld [vmem:[%s0 + $0x10] sm:$0x3]
  %v26 = vld [vmem:[%s1] sm:$0xff]
  %v27 = vld [vmem:[%s1 + $0x8] sm:$0xff]
  %v28 = vld [vmem:[%s1 + $0x10] sm:$0xff]
  %v29 = vld [vmem:[%s1 + $0x18] sm:$0xff]
  %v30 = vld [vmem:[%s3] sm:$0x1]
  %v32 = vperm.slane %v30, 0
  %vm34 = vcmask 261120
  %v36 = vsel %vm34, %v23, 0
  %v39 = vsel %vm34, %v24, 0
  %v42 = vsel %vm34, %v25, 0
  %44 = vmatpush.msra.mxu0 0.0
  %45 = vmatpush.msra.mxu0 0.0
  %46 = vmatpush.msra.mxu0 0.0
  %47 = vmatpush.msra.mxu0 0.0
  %48 = vmatpush.msra.mxu0 0.0
  %49 = vmatpush.msra.mxu0 0.0
  %50 = vmatpush.msra.mxu0 0.0
  %51 = vmatpush.msra.mxu0 0.0
  %52 = vmatpush.msra.mxu0 0.0
  %53 = vmatpush.msra.mxu0 0.0
  %54 = vmatpush.msra.mxu0 0.0
  %55 = vmatpush.msra.mxu0 0.0
  %56 = vmatpush.msra.mxu0 %v29
  %57 = vmatpush.msra.mxu0 %v28
  %58 = vmatpush.msra.mxu0 %v27
  %59 = vmatpush.msra.mxu0 %v26
  %60 = vmatmul.f32.gmra.mxu0 %v36
  %v61 = vpop.f32.mrf.mxu0
  %v62 = vadd.f32 %v32, %v61
  %63 = vmatmul.f32.gmra.mxu0 %v39
  %v64 = vpop.f32.mrf.mxu0
  %v65 = vadd.f32 %v32, %v64
  %66 = vmatmul.f32.gmra.mxu0 %v42
  %v67 = vpop.f32.mrf.mxu0
  %v68 = vadd.f32 %v32, %v67
  %69 = vdwg.mxu0
  %70 = vst [vmem:[#allocation2] sm:$0xff] %v62
  %71 = vst [vmem:[#allocation2 + $0x8] sm:$0xff] %v65
  %72 = vst [vmem:[#allocation2 + $0x10] sm:$0x3] %v68
  %v73 = vld [vmem:[#allocation2] sm:$0x3]
  %v74 = vld [vmem:[%s2] sm:$0xff]
  %v75 = vld [vmem:[%s2 + $0x8] sm:$0xff]
  %v76 = vld [vmem:[%s2 + $0x10] sm:$0xff]
  %v77 = vld [vmem:[%s2 + $0x18] sm:$0xff]
  %v79 = vsel %vm34, 0.0, 0
  %81 = vmatpush.msra.mxu0 0.0
  %82 = vmatpush.msra.mxu0 0.0
  %83 = vmatpush.msra.mxu0 0.0
  %84 = vmatpush.msra.mxu0 0.0
  %85 = vmatpush.msra.mxu0 0.0
  %86 = vmatpush.msra.mxu0 0.0
  %87 = vmatpush.msra.mxu0 0.0
  %88 = vmatpush.msra.mxu0 0.0
  %89 = vmatpush.msra.mxu0 0.0
  %90 = vmatpush.msra.mxu0 0.0
  %91 = vmatpush.msra.mxu0 0.0
  %92 = vmatpush.msra.mxu0 0.0
  %93 = vmatpush.msra.mxu0 %v77
  %94 = vmatpush.msra.mxu0 %v76
  %95 = vmatpush.msra.mxu0 %v75
  %96 = vmatpush.msra.mxu0 %v74
  %97 = vmatmul.f32.gmra.mxu0 %v79
  %v98 = vpop.f32.mrf.mxu0
  %v99 = vadd.f32 0.0, %v98
  %100 = vdwg.mxu0
  %v101 = vadd.f32 %v73, %v99
  %v102 = vxor.u32 %v101, 2147483648
  %v103 = vmul.f32 %v102, 1.442695
  %v104 = vpow.pop %v103
  %v105 = vadd.f32 %v104, 1.0
  %v106 = vrcp.pop %v105
  %v107 = vmul.f32 %v105, %v106
  %v108 = vsub.f32 1.0, %v107
  %v109 = vmul.f32 %v106, %v108
  %v110 = vadd.f32 %v106, %v109
  %vm111 = vweird.f32 %v105
  %vm112 = vweird.f32 %v106
  %vm113 = vmor %vm111, %vm112
  %v114 = vsel %vm113, %v106, %v110
  %v115 = vand.u32 2147483647, %v105
  %vm116 = vcmp.eq.f32.partialorder %v115, 8.507059e+37
  %v117 = vand.u32 %v105, 2147483648
  %v118 = vor.u32 1.1754944e-38, %v117
  %v119 = vsel %vm116, %v118, %v114
  %v120 = vmul.f32 1.0, %v119
  %v121 = vtanh.pop %v101
  %v122 = vmul.f32 %v120, 0.0
  %124 = vrot.lane.b32.xlu0 %v121, 64
  %v125 = vpop.permute.xlu0 %124
  %v127 = vmul.f32 %v120, %v125
  %129 = vrot.lane.b32.xlu0 %v127, 32
  %v130 = vpop.permute.xlu0 %129
  %v132 = vadd.f32 %v122, %v130
  %v133 = vtanh.pop %v132
  %135 = vrot.lane.b32.xlu0 %v133, 64
  %v136 = vpop.permute.xlu0 %135
  %v138 = vmul.f32 %v120, %v136
  %140 = vrot.lane.b32.xlu0 %v138, 32
  %v141 = vpop.permute.xlu0 %140
  %vm143 = vcmask 254976
  %144 = vst.msk [vmem:[#allocation3] sm:$0x3] %vm143, %v141
  %s145 = scalar_lea.vmem [#allocation2], 2
  %v146 = vld [vmem:[%s145] sm:$0x3]
  %v147 = vld [vmem:[%s2] sm:$0xff]
  %v148 = vld [vmem:[%s2 + $0x8] sm:$0xff]
  %v149 = vld [vmem:[%s2 + $0x10] sm:$0xff]
  %v150 = vld [vmem:[%s2 + $0x18] sm:$0xff]
  %v151 = vsel %vm34, %v141, 0
  %153 = vmatpush.msra.mxu0 0.0
  %154 = vmatpush.msra.mxu0 0.0
  %155 = vmatpush.msra.mxu0 0.0
  %156 = vmatpush.msra.mxu0 0.0
  %157 = vmatpush.msra.mxu0 0.0
  %158 = vmatpush.msra.mxu0 0.0
  %159 = vmatpush.msra.mxu0 0.0
  %160 = vmatpush.msra.mxu0 0.0
  %161 = vmatpush.msra.mxu0 0.0
  %162 = vmatpush.msra.mxu0 0.0
  %163 = vmatpush.msra.mxu0 0.0
  %164 = vmatpush.msra.mxu0 0.0
  %165 = vmatpush.msra.mxu0 %v150
  %166 = vmatpush.msra.mxu0 %v149
  %167 = vmatpush.msra.mxu0 %v148
  %168 = vmatpush.msra.mxu0 %v147
  %169 = vmatmul.f32.gmra.mxu0 %v151
  %v170 = vpop.f32.mrf.mxu0
  %v171 = vadd.f32 0.0, %v170
  %172 = vdwg.mxu0
  %v173 = vadd.f32 %v146, %v171
  %v174 = vxor.u32 %v173, 2147483648
  %v175 = vmul.f32 %v174, 1.442695
  %v176 = vpow.pop %v175
  %v177 = vadd.f32 %v176, 1.0
  %v178 = vrcp.pop %v177
  %v179 = vmul.f32 %v177, %v178
  %v180 = vsub.f32 1.0, %v179
  %v181 = vmul.f32 %v178, %v180
  %v182 = vadd.f32 %v178, %v181
  %vm183 = vweird.f32 %v177
  %vm184 = vweird.f32 %v178
  %vm185 = vmor %vm183, %vm184
  %v186 = vsel %vm185, %v178, %v182
  %v187 = vand.u32 2147483647, %v177
  %vm188 = vcmp.eq.f32.partialorder %v187, 8.507059e+37
  %v189 = vand.u32 %v177, 2147483648
  %v190 = vor.u32 1.1754944e-38, %v189
  %v191 = vsel %vm188, %v190, %v186
  %v192 = vmul.f32 1.0, %v191
  %v193 = vtanh.pop %v173
  %v194 = vmul.f32 %v192, %v132
  %196 = vrot.lane.b32.xlu0 %v193, 64
  %v197 = vpop.permute.xlu0 %196
  %v199 = vmul.f32 %v192, %v197
  %201 = vrot.lane.b32.xlu0 %v199, 32
  %v202 = vpop.permute.xlu0 %201
  %v204 = vadd.f32 %v194, %v202
  %v205 = vtanh.pop %v204
  %207 = vrot.lane.b32.xlu0 %v205, 64
  %v208 = vpop.permute.xlu0 %207
  %v210 = vmul.f32 %v192, %v208
  %212 = vrot.lane.b32.xlu0 %v210, 32
  %v213 = vpop.permute.xlu0 %212
  %s215 = scalar_lea.vmem [#allocation3], 2
  %216 = vst.msk [vmem:[%s215] sm:$0x3] %vm143, %v213
  %s217 = scalar_lea.vmem [#allocation2], 4
  %v218 = vld [vmem:[%s217] sm:$0x3]
  %v219 = vld [vmem:[%s2] sm:$0xff]
  %v220 = vld [vmem:[%s2 + $0x8] sm:$0xff]
  %v221 = vld [vmem:[%s2 + $0x10] sm:$0xff]
  %v222 = vld [vmem:[%s2 + $0x18] sm:$0xff]
  %v223 = vsel %vm34, %v213, 0
  %225 = vmatpush.msra.mxu0 0.0
  %226 = vmatpush.msra.mxu0 0.0
  %227 = vmatpush.msra.mxu0 0.0
  %228 = vmatpush.msra.mxu0 0.0
  %229 = vmatpush.msra.mxu0 0.0
  %230 = vmatpush.msra.mxu0 0.0
  %231 = vmatpush.msra.mxu0 0.0
  %232 = vmatpush.msra.mxu0 0.0
  %233 = vmatpush.msra.mxu0 0.0
  %234 = vmatpush.msra.mxu0 0.0
  %235 = vmatpush.msra.mxu0 0.0
  %236 = vmatpush.msra.mxu0 0.0
  %237 = vmatpush.msra.mxu0 %v222
  %238 = vmatpush.msra.mxu0 %v221
  %239 = vmatpush.msra.mxu0 %v220
  %240 = vmatpush.msra.mxu0 %v219
  %241 = vmatmul.f32.gmra.mxu0 %v223
  %v242 = vpop.f32.mrf.mxu0
  %v243 = vadd.f32 0.0, %v242
  %244 = vdwg.mxu0
  %v245 = vadd.f32 %v218, %v243
  %v246 = vxor.u32 %v245, 2147483648
  %v247 = vmul.f32 %v246, 1.442695
  %v248 = vpow.pop %v247
  %v249 = vadd.f32 %v248, 1.0
  %v250 = vrcp.pop %v249
  %v251 = vmul.f32 %v249, %v250
  %v252 = vsub.f32 1.0, %v251
  %v253 = vmul.f32 %v250, %v252
  %v254 = vadd.f32 %v250, %v253
  %vm255 = vweird.f32 %v249
  %vm256 = vweird.f32 %v250
  %vm257 = vmor %vm255, %vm256
  %v258 = vsel %vm257, %v250, %v254
  %v259 = vand.u32 2147483647, %v249
  %vm260 = vcmp.eq.f32.partialorder %v259, 8.507059e+37
  %v261 = vand.u32 %v249, 2147483648
  %v262 = vor.u32 1.1754944e-38, %v261
  %v263 = vsel %vm260, %v262, %v258
  %v264 = vmul.f32 1.0, %v263
  %v265 = vtanh.pop %v245
  %v266 = vmul.f32 %v264, %v204
  %268 = vrot.lane.b32.xlu0 %v265, 64
  %v269 = vpop.permute.xlu0 %268
  %v271 = vmul.f32 %v264, %v269
  %273 = vrot.lane.b32.xlu0 %v271, 32
  %v274 = vpop.permute.xlu0 %273
  %v276 = vadd.f32 %v266, %v274
  %v277 = vtanh.pop %v276
  %279 = vrot.lane.b32.xlu0 %v277, 64
  %v280 = vpop.permute.xlu0 %279
  %v282 = vmul.f32 %v264, %v280
  %284 = vrot.lane.b32.xlu0 %v282, 32
  %v285 = vpop.permute.xlu0 %284
  %s287 = scalar_lea.vmem [#allocation3], 4
  %288 = vst.msk [vmem:[%s287] sm:$0x3] %vm143, %v285
  %s289 = scalar_lea.vmem [#allocation2], 6
  %v290 = vld [vmem:[%s289] sm:$0x3]
  %v291 = vld [vmem:[%s2] sm:$0xff]
  %v292 = vld [vmem:[%s2 + $0x8] sm:$0xff]
  %v293 = vld [vmem:[%s2 + $0x10] sm:$0xff]
  %v294 = vld [vmem:[%s2 + $0x18] sm:$0xff]
  %v295 = vsel %vm34, %v285, 0
  %297 = vmatpush.msra.mxu0 0.0
  %298 = vmatpush.msra.mxu0 0.0
  %299 = vmatpush.msra.mxu0 0.0
  %300 = vmatpush.msra.mxu0 0.0
  %301 = vmatpush.msra.mxu0 0.0
  %302 = vmatpush.msra.mxu0 0.0
  %303 = vmatpush.msra.mxu0 0.0
  %304 = vmatpush.msra.mxu0 0.0
  %305 = vmatpush.msra.mxu0 0.0
  %306 = vmatpush.msra.mxu0 0.0
  %307 = vmatpush.msra.mxu0 0.0
  %308 = vmatpush.msra.mxu0 0.0
  %309 = vmatpush.msra.mxu0 %v294
  %310 = vmatpush.msra.mxu0 %v293
  %311 = vmatpush.msra.mxu0 %v292
  %312 = vmatpush.msra.mxu0 %v291
  %313 = vmatmul.f32.gmra.mxu0 %v295
  %v314 = vpop.f32.mrf.mxu0
  %v315 = vadd.f32 0.0, %v314
  %316 = vdwg.mxu0
  %v317 = vadd.f32 %v290, %v315
  %v318 = vxor.u32 %v317, 2147483648
  %v319 = vmul.f32 %v318, 1.442695
  %v320 = vpow.pop %v319
  %v321 = vadd.f32 %v320, 1.0
  %v322 = vrcp.pop %v321
  %v323 = vmul.f32 %v321, %v322
  %v324 = vsub.f32 1.0, %v323
  %v325 = vmul.f32 %v322, %v324
  %v326 = vadd.f32 %v322, %v325
  %vm327 = vweird.f32 %v321
  %vm328 = vweird.f32 %v322
  %vm329 = vmor %vm327, %vm328
  %v330 = vsel %vm329, %v322, %v326
  %v331 = vand.u32 2147483647, %v321
  %vm332 = vcmp.eq.f32.partialorder %v331, 8.507059e+37
  %v333 = vand.u32 %v321, 2147483648
  %v334 = vor.u32 1.1754944e-38, %v333
  %v335 = vsel %vm332, %v334, %v330
  %v336 = vmul.f32 1.0, %v335
  %v337 = vtanh.pop %v317
  %v338 = vmul.f32 %v336, %v276
  %340 = vrot.lane.b32.xlu0 %v337, 64
  %v341 = vpop.permute.xlu0 %340
  %v343 = vmul.f32 %v336, %v341
  %345 = vrot.lane.b32.xlu0 %v343, 32
  %v346 = vpop.permute.xlu0 %345
  %v348 = vadd.f32 %v338, %v346
  %v349 = vtanh.pop %v348
  %351 = vrot.lane.b32.xlu0 %v349, 64
  %v352 = vpop.permute.xlu0 %351
  %v354 = vmul.f32 %v336, %v352
  %356 = vrot.lane.b32.xlu0 %v354, 32
  %v357 = vpop.permute.xlu0 %356
  %s359 = scalar_lea.vmem [#allocation3], 6
  %360 = vst.msk [vmem:[%s359] sm:$0x3] %vm143, %v357
  %s361 = scalar_lea.vmem [#allocation2], 8
  %v362 = vld [vmem:[%s361] sm:$0x3]
  %v363 = vld [vmem:[%s2] sm:$0xff]
  %v364 = vld [vmem:[%s2 + $0x8] sm:$0xff]
  %v365 = vld [vmem:[%s2 + $0x10] sm:$0xff]
  %v366 = vld [vmem:[%s2 + $0x18] sm:$0xff]
  %v367 = vsel %vm34, %v357, 0
  %369 = vmatpush.msra.mxu0 0.0
  %370 = vmatpush.msra.mxu0 0.0
  %371 = vmatpush.msra.mxu0 0.0
  %372 = vmatpush.msra.mxu0 0.0
  %373 = vmatpush.msra.mxu0 0.0
  %374 = vmatpush.msra.mxu0 0.0
  %375 = vmatpush.msra.mxu0 0.0
  %376 = vmatpush.msra.mxu0 0.0
  %377 = vmatpush.msra.mxu0 0.0
  %378 = vmatpush.msra.mxu0 0.0
  %379 = vmatpush.msra.mxu0 0.0
  %380 = vmatpush.msra.mxu0 0.0
  %381 = vmatpush.msra.mxu0 %v366
  %382 = vmatpush.msra.mxu0 %v365
  %383 = vmatpush.msra.mxu0 %v364
  %384 = vmatpush.msra.mxu0 %v363
  %385 = vmatmul.f32.gmra.mxu0 %v367
  %v386 = vpop.f32.mrf.mxu0
  %v387 = vadd.f32 0.0, %v386
  %388 = vdwg.mxu0
  %v389 = vadd.f32 %v362, %v387
  %v390 = vxor.u32 %v389, 2147483648
  %v391 = vmul.f32 %v390, 1.442695
  %v392 = vpow.pop %v391
  %v393 = vadd.f32 %v392, 1.0
  %v394 = vrcp.pop %v393
  %v395 = vmul.f32 %v393, %v394
  %v396 = vsub.f32 1.0, %v395
  %v397 = vmul.f32 %v394, %v396
  %v398 = vadd.f32 %v394, %v397
  %vm399 = vweird.f32 %v393
  %vm400 = vweird.f32 %v394
  %vm401 = vmor %vm399, %vm400
  %v402 = vsel %vm401, %v394, %v398
  %v403 = vand.u32 2147483647, %v393
  %vm404 = vcmp.eq.f32.partialorder %v403, 8.507059e+37
  %v405 = vand.u32 %v393, 2147483648
  %v406 = vor.u32 1.1754944e-38, %v405
  %v407 = vsel %vm404, %v406, %v402
  %v408 = vmul.f32 1.0, %v407
  %v409 = vtanh.pop %v389
  %v410 = vmul.f32 %v408, %v348
  %412 = vrot.lane.b32.xlu0 %v409, 64
  %v413 = vpop.permute.xlu0 %412
  %v415 = vmul.f32 %v408, %v413
  %417 = vrot.lane.b32.xlu0 %v415, 32
  %v418 = vpop.permute.xlu0 %417
  %v420 = vadd.f32 %v410, %v418
  %v421 = vtanh.pop %v420
  %423 = vrot.lane.b32.xlu0 %v421, 64
  %v424 = vpop.permute.xlu0 %423
  %v426 = vmul.f32 %v408, %v424
  %428 = vrot.lane.b32.xlu0 %v426, 32
  %v429 = vpop.permute.xlu0 %428
  %s431 = scalar_lea.vmem [#allocation3], 8
  %432 = vst.msk [vmem:[%s431] sm:$0x3] %vm143, %v429
  %s433 = scalar_lea.vmem [#allocation2], 10
  %v434 = vld [vmem:[%s433] sm:$0x3]
  %v435 = vld [vmem:[%s2] sm:$0xff]
  %v436 = vld [vmem:[%s2 + $0x8] sm:$0xff]
  %v437 = vld [vmem:[%s2 + $0x10] sm:$0xff]
  %v438 = vld [vmem:[%s2 + $0x18] sm:$0xff]
  %v439 = vsel %vm34, %v429, 0
  %441 = vmatpush.msra.mxu0 0.0
  %442 = vmatpush.msra.mxu0 0.0
  %443 = vmatpush.msra.mxu0 0.0
  %444 = vmatpush.msra.mxu0 0.0
  %445 = vmatpush.msra.mxu0 0.0
  %446 = vmatpush.msra.mxu0 0.0
  %447 = vmatpush.msra.mxu0 0.0
  %448 = vmatpush.msra.mxu0 0.0
  %449 = vmatpush.msra.mxu0 0.0
  %450 = vmatpush.msra.mxu0 0.0
  %451 = vmatpush.msra.mxu0 0.0
  %452 = vmatpush.msra.mxu0 0.0
  %453 = vmatpush.msra.mxu0 %v438
  %454 = vmatpush.msra.mxu0 %v437
  %455 = vmatpush.msra.mxu0 %v436
  %456 = vmatpush.msra.mxu0 %v435
  %457 = vmatmul.f32.gmra.mxu0 %v439
  %v458 = vpop.f32.mrf.mxu0
  %v459 = vadd.f32 0.0, %v458
  %460 = vdwg.mxu0
  %v461 = vadd.f32 %v434, %v459
  %v462 = vxor.u32 %v461, 2147483648
  %v463 = vmul.f32 %v462, 1.442695
  %v464 = vpow.pop %v463
  %v465 = vadd.f32 %v464, 1.0
  %v466 = vrcp.pop %v465
  %v467 = vmul.f32 %v465, %v466
  %v468 = vsub.f32 1.0, %v467
  %v469 = vmul.f32 %v466, %v468
  %v470 = vadd.f32 %v466, %v469
  %vm471 = vweird.f32 %v465
  %vm472 = vweird.f32 %v466
  %vm473 = vmor %vm471, %vm472
  %v474 = vsel %vm473, %v466, %v470
  %v475 = vand.u32 2147483647, %v465
  %vm476 = vcmp.eq.f32.partialorder %v475, 8.507059e+37
  %v477 = vand.u32 %v465, 2147483648
  %v478 = vor.u32 1.1754944e-38, %v477
  %v479 = vsel %vm476, %v478, %v474
  %v480 = vmul.f32 1.0, %v479
  %v481 = vtanh.pop %v461
  %v482 = vmul.f32 %v480, %v420
  %484 = vrot.lane.b32.xlu0 %v481, 64
  %v485 = vpop.permute.xlu0 %484
  %v487 = vmul.f32 %v480, %v485
  %489 = vrot.lane.b32.xlu0 %v487, 32
  %v490 = vpop.permute.xlu0 %489
  %v492 = vadd.f32 %v482, %v490
  %v493 = vtanh.pop %v492
  %495 = vrot.lane.b32.xlu0 %v493, 64
  %v496 = vpop.permute.xlu0 %495
  %v498 = vmul.f32 %v480, %v496
  %500 = vrot.lane.b32.xlu0 %v498, 32
  %v501 = vpop.permute.xlu0 %500
  %s503 = scalar_lea.vmem [#allocation3], 10
  %504 = vst.msk [vmem:[%s503] sm:$0x3] %vm143, %v501
  %s505 = scalar_lea.vmem [#allocation2], 12
  %v506 = vld [vmem:[%s505] sm:$0x3]
  %v507 = vld [vmem:[%s2] sm:$0xff]
  %v508 = vld [vmem:[%s2 + $0x8] sm:$0xff]
  %v509 = vld [vmem:[%s2 + $0x10] sm:$0xff]
  %v510 = vld [vmem:[%s2 + $0x18] sm:$0xff]
  %v511 = vsel %vm34, %v501, 0
  %513 = vmatpush.msra.mxu0 0.0
  %514 = vmatpush.msra.mxu0 0.0
  %515 = vmatpush.msra.mxu0 0.0
  %516 = vmatpush.msra.mxu0 0.0
  %517 = vmatpush.msra.mxu0 0.0
  %518 = vmatpush.msra.mxu0 0.0
  %519 = vmatpush.msra.mxu0 0.0
  %520 = vmatpush.msra.mxu0 0.0
  %521 = vmatpush.msra.mxu0 0.0
  %522 = vmatpush.msra.mxu0 0.0
  %523 = vmatpush.msra.mxu0 0.0
  %524 = vmatpush.msra.mxu0 0.0
  %525 = vmatpush.msra.mxu0 %v510
  %526 = vmatpush.msra.mxu0 %v509
  %527 = vmatpush.msra.mxu0 %v508
  %528 = vmatpush.msra.mxu0 %v507
  %529 = vmatmul.f32.gmra.mxu0 %v511
  %v530 = vpop.f32.mrf.mxu0
  %v531 = vadd.f32 0.0, %v530
  %532 = vdwg.mxu0
  %v533 = vadd.f32 %v506, %v531
  %v534 = vxor.u32 %v533, 2147483648
  %v535 = vmul.f32 %v534, 1.442695
  %v536 = vpow.pop %v535
  %v537 = vadd.f32 %v536, 1.0
  %v538 = vrcp.pop %v537
  %v539 = vmul.f32 %v537, %v538
  %v540 = vsub.f32 1.0, %v539
  %v541 = vmul.f32 %v538, %v540
  %v542 = vadd.f32 %v538, %v541
  %vm543 = vweird.f32 %v537
  %vm544 = vweird.f32 %v538
  %vm545 = vmor %vm543, %vm544
  %v546 = vsel %vm545, %v538, %v542
  %v547 = vand.u32 2147483647, %v537
  %vm548 = vcmp.eq.f32.partialorder %v547, 8.507059e+37
  %v549 = vand.u32 %v537, 2147483648
  %v550 = vor.u32 1.1754944e-38, %v549
  %v551 = vsel %vm548, %v550, %v546
  %v552 = vmul.f32 1.0, %v551
  %v553 = vtanh.pop %v533
  %v554 = vmul.f32 %v552, %v492
  %556 = vrot.lane.b32.xlu0 %v553, 64
  %v557 = vpop.permute.xlu0 %556
  %v559 = vmul.f32 %v552, %v557
  %561 = vrot.lane.b32.xlu0 %v559, 32
  %v562 = vpop.permute.xlu0 %561
  %v564 = vadd.f32 %v554, %v562
  %v565 = vtanh.pop %v564
  %567 = vrot.lane.b32.xlu0 %v565, 64
  %v568 = vpop.permute.xlu0 %567
  %v570 = vmul.f32 %v552, %v568
  %572 = vrot.lane.b32.xlu0 %v570, 32
  %v573 = vpop.permute.xlu0 %572
  %s575 = scalar_lea.vmem [#allocation3], 12
  %576 = vst.msk [vmem:[%s575] sm:$0x3] %vm143, %v573
  %s577 = scalar_lea.vmem [#allocation2], 14
  %v578 = vld [vmem:[%s577] sm:$0x3]
  %v579 = vld [vmem:[%s2] sm:$0xff]
  %v580 = vld [vmem:[%s2 + $0x8] sm:$0xff]
  %v581 = vld [vmem:[%s2 + $0x10] sm:$0xff]
  %v582 = vld [vmem:[%s2 + $0x18] sm:$0xff]
  %v583 = vsel %vm34, %v573, 0
  %585 = vmatpush.msra.mxu0 0.0
  %586 = vmatpush.msra.mxu0 0.0
  %587 = vmatpush.msra.mxu0 0.0
  %588 = vmatpush.msra.mxu0 0.0
  %589 = vmatpush.msra.mxu0 0.0
  %590 = vmatpush.msra.mxu0 0.0
  %591 = vmatpush.msra.mxu0 0.0
  %592 = vmatpush.msra.mxu0 0.0
  %593 = vmatpush.msra.mxu0 0.0
  %594 = vmatpush.msra.mxu0 0.0
  %595 = vmatpush.msra.mxu0 0.0
  %596 = vmatpush.msra.mxu0 0.0
  %597 = vmatpush.msra.mxu0 %v582
  %598 = vmatpush.msra.mxu0 %v581
  %599 = vmatpush.msra.mxu0 %v580
  %600 = vmatpush.msra.mxu0 %v579
  %601 = vmatmul.f32.gmra.mxu0 %v583
  %v602 = vpop.f32.mrf.mxu0
  %v603 = vadd.f32 0.0, %v602
  %604 = vdwg.mxu0
  %v605 = vadd.f32 %v578, %v603
  %v606 = vxor.u32 %v605, 2147483648
  %v607 = vmul.f32 %v606, 1.442695
  %v608 = vpow.pop %v607
  %v609 = vadd.f32 %v608, 1.0
  %v610 = vrcp.pop %v609
  %v611 = vmul.f32 %v609, %v610
  %v612 = vsub.f32 1.0, %v611
  %v613 = vmul.f32 %v610, %v612
  %v614 = vadd.f32 %v610, %v613
  %vm615 = vweird.f32 %v609
  %vm616 = vweird.f32 %v610
  %vm617 = vmor %vm615, %vm616
  %v618 = vsel %vm617, %v610, %v614
  %v619 = vand.u32 2147483647, %v609
  %vm620 = vcmp.eq.f32.partialorder %v619, 8.507059e+37
  %v621 = vand.u32 %v609, 2147483648
  %v622 = vor.u32 1.1754944e-38, %v621
  %v623 = vsel %vm620, %v622, %v618
  %v624 = vmul.f32 1.0, %v623
  %v625 = vtanh.pop %v605
  %v626 = vmul.f32 %v624, %v564
  %628 = vrot.lane.b32.xlu0 %v625, 64
  %v629 = vpop.permute.xlu0 %628
  %v631 = vmul.f32 %v624, %v629
  %633 = vrot.lane.b32.xlu0 %v631, 32
  %v634 = vpop.permute.xlu0 %633
  %v636 = vadd.f32 %v626, %v634
  %v637 = vtanh.pop %v636
  %639 = vrot.lane.b32.xlu0 %v637, 64
  %v640 = vpop.permute.xlu0 %639
  %v642 = vmul.f32 %v624, %v640
  %644 = vrot.lane.b32.xlu0 %v642, 32
  %v645 = vpop.permute.xlu0 %644
  %s647 = scalar_lea.vmem [#allocation3], 14
  %648 = vst.msk [vmem:[%s647] sm:$0x3] %vm143, %v645
  %s649 = scalar_lea.vmem [#allocation2], 16
  %v650 = vld [vmem:[%s649] sm:$0x3]
  %v651 = vld [vmem:[%s2] sm:$0xff]
  %v652 = vld [vmem:[%s2 + $0x8] sm:$0xff]
  %v653 = vld [vmem:[%s2 + $0x10] sm:$0xff]
  %v654 = vld [vmem:[%s2 + $0x18] sm:$0xff]
  %v655 = vsel %vm34, %v645, 0
  %657 = vmatpush.msra.mxu0 0.0
  %658 = vmatpush.msra.mxu0 0.0
  %659 = vmatpush.msra.mxu0 0.0
  %660 = vmatpush.msra.mxu0 0.0
  %661 = vmatpush.msra.mxu0 0.0
  %662 = vmatpush.msra.mxu0 0.0
  %663 = vmatpush.msra.mxu0 0.0
  %664 = vmatpush.msra.mxu0 0.0
  %665 = vmatpush.msra.mxu0 0.0
  %666 = vmatpush.msra.mxu0 0.0
  %667 = vmatpush.msra.mxu0 0.0
  %668 = vmatpush.msra.mxu0 0.0
  %669 = vmatpush.msra.mxu0 %v654
  %670 = vmatpush.msra.mxu0 %v653
  %671 = vmatpush.msra.mxu0 %v652
  %672 = vmatpush.msra.mxu0 %v651
  %673 = vmatmul.f32.gmra.mxu0 %v655
  %v674 = vpop.f32.mrf.mxu0
  %v675 = vadd.f32 0.0, %v674
  %676 = vdwg.mxu0
  %v677 = vadd.f32 %v650, %v675
  %v678 = vxor.u32 %v677, 2147483648
  %v679 = vmul.f32 %v678, 1.442695
  %v680 = vpow.pop %v679
  %v681 = vadd.f32 %v680, 1.0
  %v682 = vrcp.pop %v681
  %v683 = vmul.f32 %v681, %v682
  %v684 = vsub.f32 1.0, %v683
  %v685 = vmul.f32 %v682, %v684
  %v686 = vadd.f32 %v682, %v685
  %vm687 = vweird.f32 %v681
  %vm688 = vweird.f32 %v682
  %vm689 = vmor %vm687, %vm688
  %v690 = vsel %vm689, %v682, %v686
  %v691 = vand.u32 2147483647, %v681
  %vm692 = vcmp.eq.f32.partialorder %v691, 8.507059e+37
  %v693 = vand.u32 %v681, 2147483648
  %v694 = vor.u32 1.1754944e-38, %v693
  %v695 = vsel %vm692, %v694, %v690
  %v696 = vmul.f32 1.0, %v695
  %v697 = vtanh.pop %v677
  %v698 = vmul.f32 %v696, %v636
  %700 = vrot.lane.b32.xlu0 %v697, 64
  %v701 = vpop.permute.xlu0 %700
  %v703 = vmul.f32 %v696, %v701
  %705 = vrot.lane.b32.xlu0 %v703, 32
  %v706 = vpop.permute.xlu0 %705
  %v708 = vadd.f32 %v698, %v706
  %v709 = vtanh.pop %v708
  %711 = vrot.lane.b32.xlu0 %v709, 64
  %v712 = vpop.permute.xlu0 %711
  %v714 = vmul.f32 %v696, %v712
  %716 = vrot.lane.b32.xlu0 %v714, 32
  %v717 = vpop.permute.xlu0 %716
  %s719 = scalar_lea.vmem [#allocation3], 16
  %720 = vst.msk [vmem:[%s719] sm:$0x3] %vm143, %v717
  %v721 = vld [vmem:[#allocation3] sm:$0xff]
  %v722 = vld [vmem:[#allocation3 + $0x8] sm:$0xff]
  %v723 = vld [vmem:[#allocation3 + $0x10] sm:$0x3]
  %v724 = vld [vmem:[%s4] sm:$0xff]
  %v725 = vld [vmem:[%s4 + $0x8] sm:$0xff]
  %v726 = vld [vmem:[%s4 + $0x10] sm:$0xff]
  %v727 = vld [vmem:[%s4 + $0x18] sm:$0xff]
  %v728 = vld [vmem:[%s5] sm:$0x1]
  %v730 = vperm.slane %v728, 0
  %v733 = vsel %vm34, %v721, 0
  %v736 = vsel %vm34, %v722, 0
  %v739 = vsel %vm34, %v723, 0
  %741 = vmatpush.msra.mxu0 0.0
  %742 = vmatpush.msra.mxu0 0.0
  %743 = vmatpush.msra.mxu0 0.0
  %744 = vmatpush.msra.mxu0 0.0
  %745 = vmatpush.msra.mxu0 0.0
  %746 = vmatpush.msra.mxu0 0.0
  %747 = vmatpush.msra.mxu0 0.0
  %748 = vmatpush.msra.mxu0 0.0
  %749 = vmatpush.msra.mxu0 0.0
  %750 = vmatpush.msra.mxu0 0.0
  %751 = vmatpush.msra.mxu0 0.0
  %752 = vmatpush.msra.mxu0 0.0
  %753 = vmatpush.msra.mxu0 %v727
  %754 = vmatpush.msra.mxu0 %v726
  %755 = vmatpush.msra.mxu0 %v725
  %756 = vmatpush.msra.mxu0 %v724
  %757 = vmatmul.f32.gmra.mxu0 %v733
  %v758 = vpop.f32.mrf.mxu0
  %v759 = vadd.f32 %v730, %v758
  %760 = vmatmul.f32.gmra.mxu0 %v736
  %v761 = vpop.f32.mrf.mxu0
  %v762 = vadd.f32 %v730, %v761
  %763 = vmatmul.f32.gmra.mxu0 %v739
  %v764 = vpop.f32.mrf.mxu0
  %v765 = vadd.f32 %v730, %v764
  %766 = vdwg.mxu0
  %767 = vst [vmem:[%s6] sm:$0xff] %v759
  %768 = vst [vmem:[%s6 + $0x8] sm:$0xff] %v762
  %769 = vst [vmem:[%s6 + $0x10] sm:$0x3] %v765
  // Predicated region
  $region26: #{decoder_forward.1} parent=0 // pred_check
    _
  $region27: #{decoder_forward.1} parent=0 // pred_check_branch
    %771 = sbr.rel (0) target = $region29
  $region28: #{decoder_forward.1} parent=0 // pred_region
    _
  $region29: #{decoder_forward.1} parent=0 // pred_fallthru
    _
  // Predicated region
  $region30: #{decoder_forward.1} parent=0 // pred_check
    _
  $region31: #{decoder_forward.1} parent=0 // pred_check_branch
    %773 = sbr.rel (0) target = $region33
  $region32: #{decoder_forward.1} parent=0 // pred_region
    _
  $region33: #{decoder_forward.1} parent=0 // pred_fallthru
    _

</llo_original>
